<compile_context>
chip_gen: v5e
topology: v5e:2x2
jax: 0.10.0
libtpu: 0.0.40
codegen_flags: <defaults>
</compile_context>

<pallas_src>
import numpy as np
import jax
import jax.numpy as jnp
from jax.experimental import pallas as pl
from jax.experimental.pallas import tpu as pltpu


def _round_up(a, m):
    return ((a + m - 1) // m) * m


def _supports_bf16_eup():
    """True on TPU generations whose VPU/EUP support packed bf16 (v6e, v7x)."""
    try:
        kind = jax.devices()[0].device_kind.lower()
    except Exception:
        return False
    return ("v6" in kind) or ("v7" in kind) or ("7x" in kind)


def _vmem_capacity_bytes():
    try:
        return int(pltpu.get_tpu_info().vmem_capacity_bytes)
    except Exception:
        return 64 * 1024 * 1024  # conservative (v7x-sized) fallback


def _make_final_layer_kernel(C, use_bf16_exp):
    exp_dtype = jnp.bfloat16 if use_bf16_exp else jnp.float32

    def kernel(x_ref, t_ref, y_ref, coef_ref, w_ref, bias_ref, o_ref):
        # x_ref:    (1, 1, n_tile)   grid locations, n_in on the 128-lane axis
        # t_ref:    (1, o_tile, 1)   target locations, n_out on sublanes
        # y_ref:    (1, C, n_tile)   function values, channels on sublanes / n_in on lanes
        # coef_ref: (C,)  SMEM       -0.5 / exp(sigma_c)^2
        # w_ref:    (C,)  SMEM       Linear(C -> 1) weight row
        # bias_ref: (1,)  SMEM
        # o_ref:    (1, o_tile, 1)   output block, VMEM-resident across the k axis
        k = pl.program_id(2)

        @pl.when(k == 0)
        def _():
            o_ref[...] = jnp.zeros_like(o_ref)

        x = x_ref[...]
        t = t_ref[...]
        y = y_ref[...]

        # Pairwise squared distances: (1, o_tile, n_tile), lane-dense on n_in.
        d = x - t
        d2 = d * d

        # Unrolled channel loop -- never materializes the 4-D (b, n, C, n_out) slab.
        s = jnp.zeros(d2.shape, jnp.float32)
        for c in range(C):
            e = coef_ref[c] * d2                                    # VPU (scalar splat)
            wt = jnp.exp(e.astype(exp_dtype)).astype(jnp.float32)   # EUP (bf16 on v6e/v7x)
            yw = w_ref[c] * y[:, c:c + 1, :]                        # Linear fold, VPU
            s = s + wt * yw                                         # f32 accumulation

        # One cross-lane (XLU) reduce over this n_in tile, accumulated into the
        # resident output block.
        o_ref[...] += jnp.sum(s, axis=2, keepdims=True)

        @pl.when(k == pl.num_programs(2) - 1)
        def _():
            o_ref[...] = o_ref[...] + bias_ref[0]

    return kernel


def _choose_tiles(B, n_in, n_out, C, vmem_cap):
    """Pick (o_tile, n_tile).

    o_tile: multiple of 8 (sublane axis).  n_tile: multiple of 128 (lane axis), sized so
    the ~4 live f32 slabs of shape (1, o_tile, n_tile) plus the double-buffered
    (1, C, n_tile) y block fit the per-generation VMEM slab budget (v7x: 64 MiB total).
    """
    O_CAP = 256
    o_tile = min(_round_up(max(n_out, 1), 8), O_CAP)
    # Keep >= 2 parallel grid steps when B == 1 so both v7x TensorCores get work.
    if B == 1 and n_out > 8:
        o_tile = min(o_tile, max(8, _round_up((n_out + 1) // 2, 8)))

    budget = max(vmem_cap // 8, 2 * 1024 * 1024)
    per_n = 4 * (4 * o_tile + 2 * C + 2)  # f32 bytes per n-column of live working set
    n_cap = max(128, (budget // per_n) // 128 * 128)
    n_tile = min(_round_up(max(n_in, 1), 128), n_cap)
    return o_tile, n_tile


def final_layer(x, y, t, sigma, weight, bias, use_bf16_exp=None):
    """Pallas FinalLayer forward.

    x: (B, n_in, 1), y: (B, n_in, C), t: (B, n_out, 1),
    sigma: (C,), weight: (1, C) [torch Linear layout], bias: (1,).
    Returns (B, n_out, 1) float32.
    """
    B, n_in, _ = x.shape
    n_out = t.shape[1]
    C = y.shape[2]

    if use_bf16_exp is None:
        use_bf16_exp = _supports_bf16_eup()   # v5e and older: keep f32

    # --- hoisted parameter prep (once in XLA, not per grid step) ---
    coef = (-0.5 / (jnp.exp(sigma.astype(jnp.float32)) ** 2)).reshape(C)   # (C,)  SMEM
    wrow = weight.astype(jnp.float32).reshape(C)                           # (C,)  SMEM
    bias1 = bias.astype(jnp.float32).reshape(1)                            # (1,)  SMEM

    # --- lane-dense layouts: n_in on the 128-lane axis, n_out on sublanes ---
    x_t = x.astype(jnp.float32).reshape(B, 1, n_in)         # (B, 1, n_in)
    y_t = jnp.transpose(y.astype(jnp.float32), (0, 2, 1))   # (B, C, n_in)
    t3 = t.astype(jnp.float32)                              # (B, n_out, 1)

    vmem_cap = _vmem_capacity_bytes()
    o_tile, n_tile = _choose_tiles(B, n_in, n_out, C, vmem_cap)

    # --- zero-pad ragged axes (padded n_in rows have y = 0 -> contribute exactly 0) ---
    n_in_pad = _round_up(n_in, n_tile)
    n_out_pad = _round_up(n_out, o_tile)
    if n_in_pad != n_in:
        x_t = jnp.pad(x_t, ((0, 0), (0, 0), (0, n_in_pad - n_in)))
        y_t = jnp.pad(y_t, ((0, 0), (0, 0), (0, n_in_pad - n_in)))
    if n_out_pad != n_out:
        t3 = jnp.pad(t3, ((0, 0), (0, n_out_pad - n_out), (0, 0)))

    grid = (B, n_out_pad // o_tile, n_in_pad // n_tile)
    vmem_limit = int(min(vmem_cap * 3 // 4, 100 * 1024 * 1024))

    kernel = _make_final_layer_kernel(C, use_bf16_exp)

    out = pl.pallas_call(
        kernel,
        out_shape=jax.ShapeDtypeStruct((B, n_out_pad, 1), jnp.float32),
        grid_spec=pltpu.PrefetchScalarGridSpec(
            num_scalar_prefetch=0,
            grid=grid,
            in_specs=[
                pl.BlockSpec((1, 1, n_tile), lambda b, o, k: (b, 0, k)),      # x (lane-dense)
                pl.BlockSpec((1, o_tile, 1), lambda b, o, k: (b, o, 0)),      # t (sublanes)
                pl.BlockSpec((1, C, n_tile), lambda b, o, k: (b, 0, k)),      # y (lane-dense)
                pl.BlockSpec(memory_space=pltpu.MemorySpace.SMEM),            # coef
                pl.BlockSpec(memory_space=pltpu.MemorySpace.SMEM),            # weight row
                pl.BlockSpec(memory_space=pltpu.MemorySpace.SMEM),            # bias
            ],
            out_specs=pl.BlockSpec((1, o_tile, 1), lambda b, o, k: (b, o, 0)),
        ),
        compiler_params=pltpu.CompilerParams(
            dimension_semantics=("parallel", "parallel", "arbitrary"),
            vmem_limit_bytes=vmem_limit,
        ),
    )(x_t, t3, y_t, coef, wrow, bias1)

    return out[:, :n_out, :]


def final_layer_reference(x, y, t, sigma, weight, bias):
    """Pure-JAX reference mirroring the PyTorch forward exactly."""
    dists = (x - jnp.transpose(t, (0, 2, 1))) ** 2              # (B, n_in, n_out)
    scales = jnp.exp(sigma)[None, None, None, :]                # (1, 1, 1, C)
    wt = jnp.exp(-0.5 * dists[..., None] / (scales ** 2))       # (B, n_in, n_out, C)
    y_out = (y[:, :, None, :] * wt).sum(axis=1)                 # (B, n_out, C)
    return y_out @ weight.T + bias                              # (B, n_out, 1)


if __name__ == "__main__":
    # Small shapes consistent with FinalLayer: x_grid points (n_in), target points (n_out),
    # in_channels = rho.out_channels.
    B, n_in, n_out, C = 2, 16, 8, 16
    points_per_unit = 64
    init_length_scale = 2.0 / points_per_unit

    key = jax.random.PRNGKey(0)
    kx, kt, ky, kw, kb = jax.random.split(key, 5)

    x = jax.random.uniform(kx, (B, n_in, 1), dtype=jnp.float32)       # grid locations
    t = jax.random.uniform(kt, (B, n_out, 1), dtype=jnp.float32)      # output locations
    y = jax.random.normal(ky, (B, n_in, C), dtype=jnp.float32)        # function values on grid

    # Deterministic parameter init (synthetic; matches __init__ shapes).
    sigma = jnp.full((C,), np.log(init_length_scale), dtype=jnp.float32)   # nn.Parameter (C,)
    weight = jax.random.normal(kw, (1, C), dtype=jnp.float32) * 0.1        # Linear weight (1, C)
    bias = jax.random.normal(kb, (1,), dtype=jnp.float32) * 0.1            # Linear bias (1,)

    ref = final_layer_reference(x, y, t, sigma, weight, bias)

    # f32-exp path (valid on every TPU generation): strict tolerance.
    out_f32 = jax.block_until_ready(
        final_layer(x, y, t, sigma, weight, bias, use_bf16_exp=False))
    np.testing.assert_allclose(np.asarray(out_f32), np.asarray(ref), rtol=1e-5, atol=1e-5)

    # bf16-exp path (v6e / v7x only): relaxed tolerance vs the f32 reference.
    if _supports_bf16_eup():
        out_bf16 = jax.block_until_ready(
            final_layer(x, y, t, sigma, weight, bias, use_bf16_exp=True))
        np.testing.assert_allclose(np.asarray(out_bf16), np.asarray(ref), rtol=5e-2, atol=5e-2)

    print("KERNEL_OK")
</pallas_src>

<mosaic_0001>
module attributes {stable_mosaic.version = 11 : i64} {
  func.func @kernel(%arg0: i32, %arg1: i32, %arg2: i32, %arg3: memref<1x1x128xf32, #tpu.memory_space<vmem>>, %arg4: memref<1x8x1xf32, #tpu.memory_space<vmem>>, %arg5: memref<1x16x128xf32, #tpu.memory_space<vmem>>, %arg6: memref<16xf32, #tpu.memory_space<smem>>, %arg7: memref<16xf32, #tpu.memory_space<smem>>, %arg8: memref<1xf32, #tpu.memory_space<smem>>, %arg9: memref<1x8x1xf32, #tpu.memory_space<vmem>>) attributes {dimension_semantics = [#tpu.dimension_semantics<parallel>, #tpu.dimension_semantics<parallel>, #tpu.dimension_semantics<arbitrary>], iteration_bounds = array<i64: 2, 1, 1>, scalar_prefetch = 0 : i64, scratch_operands = 0 : i64, tpu.core_type = #tpu.core_type<tc>, window_params = [{transform_indices = @transform_0, window_bounds = array<i64: 1, 1, 128>}, {transform_indices = @transform_1, window_bounds = array<i64: 1, 8, 1>}, {transform_indices = @transform_2, window_bounds = array<i64: 1, 16, 128>}, {transform_indices = @transform_3, window_bounds = array<i64: 16>}, {transform_indices = @transform_4, window_bounds = array<i64: 16>}, {transform_indices = @transform_5, window_bounds = array<i64: 1>}, {transform_indices = @transform_6, window_bounds = array<i64: 1, 8, 1>}]} {
    %c0_i32 = arith.constant 0 : i32
    %0 = arith.cmpi eq, %arg2, %c0_i32 : i32
    %1 = arith.extui %0 : i1 to i32
    %c0_i32_0 = arith.constant 0 : i32
    %2 = arith.cmpi ne, %1, %c0_i32_0 : i32
    scf.if %2 {
      %cst_35 = arith.constant 0.000000e+00 : f32
      %195 = vector.broadcast %cst_35 : f32 to vector<1x8x1xf32>
      %c0_36 = arith.constant 0 : index
      %c0_37 = arith.constant 0 : index
      %c0_38 = arith.constant 0 : index
      %196 = vector.load %arg9[%c0_36, %c0_37, %c0_38] : memref<1x8x1xf32, #tpu.memory_space<vmem>>, vector<1x8x1xf32>
      tpu.vector_store %arg9[%c0_36, %c0_37, %c0_38], %195 {strides = array<i32>} : memref<1x8x1xf32, #tpu.memory_space<vmem>>, vector<1x8x1xf32>,
    } else {
    }
    %c0 = arith.constant 0 : index
    %c0_1 = arith.constant 0 : index
    %c0_2 = arith.constant 0 : index
    %3 = vector.load %arg3[%c0, %c0_1, %c0_2] : memref<1x1x128xf32, #tpu.memory_space<vmem>>, vector<1x1x128xf32>
    %c0_3 = arith.constant 0 : index
    %c0_4 = arith.constant 0 : index
    %c0_5 = arith.constant 0 : index
    %4 = vector.load %arg4[%c0_3, %c0_4, %c0_5] : memref<1x8x1xf32, #tpu.memory_space<vmem>>, vector<1x8x1xf32>
    %c0_6 = arith.constant 0 : index
    %c0_7 = arith.constant 0 : index
    %c0_8 = arith.constant 0 : index
    %5 = vector.load %arg5[%c0_6, %c0_7, %c0_8] : memref<1x16x128xf32, #tpu.memory_space<vmem>>, vector<1x16x128xf32>
    %6 = vector.broadcast %3 : vector<1x1x128xf32> to vector<1x8x128xf32>
    %7 = vector.broadcast %4 : vector<1x8x1xf32> to vector<1x8x128xf32>
    %8 = arith.subf %6, %7 : vector<1x8x128xf32>
    %9 = arith.mulf %8, %8 : vector<1x8x128xf32>
    %cst = arith.constant 0.000000e+00 : f32
    %10 = vector.broadcast %cst : f32 to vector<1x8x128xf32>
    %c0_9 = arith.constant 0 : index
    %11 = memref.load %arg6[%c0_9] : memref<16xf32, #tpu.memory_space<smem>>
    %12 = vector.broadcast %11 : f32 to vector<1x8x128xf32>
    %13 = arith.mulf %12, %9 : vector<1x8x128xf32>
    %14 = math.exp %13 : vector<1x8x128xf32>
    %c0_10 = arith.constant 0 : index
    %15 = memref.load %arg7[%c0_10] : memref<16xf32, #tpu.memory_space<smem>>
    %16 = vector.extract_strided_slice %5 {offsets = [0, 0, 0], sizes = [1, 1, 128], strides = [1, 1, 1]} : vector<1x16x128xf32> to vector<1x1x128xf32>
    %17 = vector.broadcast %15 : f32 to vector<1x1x128xf32>
    %18 = arith.mulf %17, %16 : vector<1x1x128xf32>
    %19 = vector.broadcast %18 : vector<1x1x128xf32> to vector<1x8x128xf32>
    %20 = arith.mulf %14, %19 : vector<1x8x128xf32>
    %21 = arith.addf %10, %20 : vector<1x8x128xf32>
    %c1 = arith.constant 1 : index
    %22 = memref.load %arg6[%c1] : memref<16xf32, #tpu.memory_space<smem>>
    %23 = vector.broadcast %22 : f32 to vector<1x8x128xf32>
    %24 = arith.mulf %23, %9 : vector<1x8x128xf32>
    %25 = math.exp %24 : vector<1x8x128xf32>
    %c1_11 = arith.constant 1 : index
    %26 = memref.load %arg7[%c1_11] : memref<16xf32, #tpu.memory_space<smem>>
    %27 = vector.extract_strided_slice %5 {offsets = [0, 1, 0], sizes = [1, 1, 128], strides = [1, 1, 1]} : vector<1x16x128xf32> to vector<1x1x128xf32>
    %28 = vector.broadcast %26 : f32 to vector<1x1x128xf32>
    %29 = arith.mulf %28, %27 : vector<1x1x128xf32>
    %30 = vector.broadcast %29 : vector<1x1x128xf32> to vector<1x8x128xf32>
    %31 = arith.mulf %25, %30 : vector<1x8x128xf32>
    %32 = arith.addf %21, %31 : vector<1x8x128xf32>
    %c2 = arith.constant 2 : index
    %33 = memref.load %arg6[%c2] : memref<16xf32, #tpu.memory_space<smem>>
    %34 = vector.broadcast %33 : f32 to vector<1x8x128xf32>
    %35 = arith.mulf %34, %9 : vector<1x8x128xf32>
    %36 = math.exp %35 : vector<1x8x128xf32>
    %c2_12 = arith.constant 2 : index
    %37 = memref.load %arg7[%c2_12] : memref<16xf32, #tpu.memory_space<smem>>
    %38 = vector.extract_strided_slice %5 {offsets = [0, 2, 0], sizes = [1, 1, 128], strides = [1, 1, 1]} : vector<1x16x128xf32> to vector<1x1x128xf32>
    %39 = vector.broadcast %37 : f32 to vector<1x1x128xf32>
    %40 = arith.mulf %39, %38 : vector<1x1x128xf32>
    %41 = vector.broadcast %40 : vector<1x1x128xf32> to vector<1x8x128xf32>
    %42 = arith.mulf %36, %41 : vector<1x8x128xf32>
    %43 = arith.addf %32, %42 : vector<1x8x128xf32>
    %c3 = arith.constant 3 : index
    %44 = memref.load %arg6[%c3] : memref<16xf32, #tpu.memory_space<smem>>
    %45 = vector.broadcast %44 : f32 to vector<1x8x128xf32>
    %46 = arith.mulf %45, %9 : vector<1x8x128xf32>
    %47 = math.exp %46 : vector<1x8x128xf32>
    %c3_13 = arith.constant 3 : index
    %48 = memref.load %arg7[%c3_13] : memref<16xf32, #tpu.memory_space<smem>>
    %49 = vector.extract_strided_slice %5 {offsets = [0, 3, 0], sizes = [1, 1, 128], strides = [1, 1, 1]} : vector<1x16x128xf32> to vector<1x1x128xf32>
    %50 = vector.broadcast %48 : f32 to vector<1x1x128xf32>
    %51 = arith.mulf %50, %49 : vector<1x1x128xf32>
    %52 = vector.broadcast %51 : vector<1x1x128xf32> to vector<1x8x128xf32>
    %53 = arith.mulf %47, %52 : vector<1x8x128xf32>
    %54 = arith.addf %43, %53 : vector<1x8x128xf32>
    %c4 = arith.constant 4 : index
    %55 = memref.load %arg6[%c4] : memref<16xf32, #tpu.memory_space<smem>>
    %56 = vector.broadcast %55 : f32 to vector<1x8x128xf32>
    %57 = arith.mulf %56, %9 : vector<1x8x128xf32>
    %58 = math.exp %57 : vector<1x8x128xf32>
    %c4_14 = arith.constant 4 : index
    %59 = memref.load %arg7[%c4_14] : memref<16xf32, #tpu.memory_space<smem>>
    %60 = vector.extract_strided_slice %5 {offsets = [0, 4, 0], sizes = [1, 1, 128], strides = [1, 1, 1]} : vector<1x16x128xf32> to vector<1x1x128xf32>
    %61 = vector.broadcast %59 : f32 to vector<1x1x128xf32>
    %62 = arith.mulf %61, %60 : vector<1x1x128xf32>
    %63 = vector.broadcast %62 : vector<1x1x128xf32> to vector<1x8x128xf32>
    %64 = arith.mulf %58, %63 : vector<1x8x128xf32>
    %65 = arith.addf %54, %64 : vector<1x8x128xf32>
    %c5 = arith.constant 5 : index
    %66 = memref.load %arg6[%c5] : memref<16xf32, #tpu.memory_space<smem>>
    %67 = vector.broadcast %66 : f32 to vector<1x8x128xf32>
    %68 = arith.mulf %67, %9 : vector<1x8x128xf32>
    %69 = math.exp %68 : vector<1x8x128xf32>
    %c5_15 = arith.constant 5 : index
    %70 = memref.load %arg7[%c5_15] : memref<16xf32, #tpu.memory_space<smem>>
    %71 = vector.extract_strided_slice %5 {offsets = [0, 5, 0], sizes = [1, 1, 128], strides = [1, 1, 1]} : vector<1x16x128xf32> to vector<1x1x128xf32>
    %72 = vector.broadcast %70 : f32 to vector<1x1x128xf32>
    %73 = arith.mulf %72, %71 : vector<1x1x128xf32>
    %74 = vector.broadcast %73 : vector<1x1x128xf32> to vector<1x8x128xf32>
    %75 = arith.mulf %69, %74 : vector<1x8x128xf32>
    %76 = arith.addf %65, %75 : vector<1x8x128xf32>
    %c6 = arith.constant 6 : index
    %77 = memref.load %arg6[%c6] : memref<16xf32, #tpu.memory_space<smem>>
    %78 = vector.broadcast %77 : f32 to vector<1x8x128xf32>
    %79 = arith.mulf %78, %9 : vector<1x8x128xf32>
    %80 = math.exp %79 : vector<1x8x128xf32>
    %c6_16 = arith.constant 6 : index
    %81 = memref.load %arg7[%c6_16] : memref<16xf32, #tpu.memory_space<smem>>
    %82 = vector.extract_strided_slice %5 {offsets = [0, 6, 0], sizes = [1, 1, 128], strides = [1, 1, 1]} : vector<1x16x128xf32> to vector<1x1x128xf32>
    %83 = vector.broadcast %81 : f32 to vector<1x1x128xf32>
    %84 = arith.mulf %83, %82 : vector<1x1x128xf32>
    %85 = vector.broadcast %84 : vector<1x1x128xf32> to vector<1x8x128xf32>
    %86 = arith.mulf %80, %85 : vector<1x8x128xf32>
    %87 = arith.addf %76, %86 : vector<1x8x128xf32>
    %c7 = arith.constant 7 : index
    %88 = memref.load %arg6[%c7] : memref<16xf32, #tpu.memory_space<smem>>
    %89 = vector.broadcast %88 : f32 to vector<1x8x128xf32>
    %90 = arith.mulf %89, %9 : vector<1x8x128xf32>
    %91 = math.exp %90 : vector<1x8x128xf32>
    %c7_17 = arith.constant 7 : index
    %92 = memref.load %arg7[%c7_17] : memref<16xf32, #tpu.memory_space<smem>>
    %93 = vector.extract_strided_slice %5 {offsets = [0, 7, 0], sizes = [1, 1, 128], strides = [1, 1, 1]} : vector<1x16x128xf32> to vector<1x1x128xf32>
    %94 = vector.broadcast %92 : f32 to vector<1x1x128xf32>
    %95 = arith.mulf %94, %93 : vector<1x1x128xf32>
    %96 = vector.broadcast %95 : vector<1x1x128xf32> to vector<1x8x128xf32>
    %97 = arith.mulf %91, %96 : vector<1x8x128xf32>
    %98 = arith.addf %87, %97 : vector<1x8x128xf32>
    %c8 = arith.constant 8 : index
    %99 = memref.load %arg6[%c8] : memref<16xf32, #tpu.memory_space<smem>>
    %100 = vector.broadcast %99 : f32 to vector<1x8x128xf32>
    %101 = arith.mulf %100, %9 : vector<1x8x128xf32>
    %102 = math.exp %101 : vector<1x8x128xf32>
    %c8_18 = arith.constant 8 : index
    %103 = memref.load %arg7[%c8_18] : memref<16xf32, #tpu.memory_space<smem>>
    %104 = vector.extract_strided_slice %5 {offsets = [0, 8, 0], sizes = [1, 1, 128], strides = [1, 1, 1]} : vector<1x16x128xf32> to vector<1x1x128xf32>
    %105 = vector.broadcast %103 : f32 to vector<1x1x128xf32>
    %106 = arith.mulf %105, %104 : vector<1x1x128xf32>
    %107 = vector.broadcast %106 : vector<1x1x128xf32> to vector<1x8x128xf32>
    %108 = arith.mulf %102, %107 : vector<1x8x128xf32>
    %109 = arith.addf %98, %108 : vector<1x8x128xf32>
    %c9 = arith.constant 9 : index
    %110 = memref.load %arg6[%c9] : memref<16xf32, #tpu.memory_space<smem>>
    %111 = vector.broadcast %110 : f32 to vector<1x8x128xf32>
    %112 = arith.mulf %111, %9 : vector<1x8x128xf32>
    %113 = math.exp %112 : vector<1x8x128xf32>
    %c9_19 = arith.constant 9 : index
    %114 = memref.load %arg7[%c9_19] : memref<16xf32, #tpu.memory_space<smem>>
    %115 = vector.extract_strided_slice %5 {offsets = [0, 9, 0], sizes = [1, 1, 128], strides = [1, 1, 1]} : vector<1x16x128xf32> to vector<1x1x128xf32>
    %116 = vector.broadcast %114 : f32 to vector<1x1x128xf32>
    %117 = arith.mulf %116, %115 : vector<1x1x128xf32>
    %118 = vector.broadcast %117 : vector<1x1x128xf32> to vector<1x8x128xf32>
    %119 = arith.mulf %113, %118 : vector<1x8x128xf32>
    %120 = arith.addf %109, %119 : vector<1x8x128xf32>
    %c10 = arith.constant 10 : index
    %121 = memref.load %arg6[%c10] : memref<16xf32, #tpu.memory_space<smem>>
    %122 = vector.broadcast %121 : f32 to vector<1x8x128xf32>
    %123 = arith.mulf %122, %9 : vector<1x8x128xf32>
    %124 = math.exp %123 : vector<1x8x128xf32>
    %c10_20 = arith.constant 10 : index
    %125 = memref.load %arg7[%c10_20] : memref<16xf32, #tpu.memory_space<smem>>
    %126 = vector.extract_strided_slice %5 {offsets = [0, 10, 0], sizes = [1, 1, 128], strides = [1, 1, 1]} : vector<1x16x128xf32> to vector<1x1x128xf32>
    %127 = vector.broadcast %125 : f32 to vector<1x1x128xf32>
    %128 = arith.mulf %127, %126 : vector<1x1x128xf32>
    %129 = vector.broadcast %128 : vector<1x1x128xf32> to vector<1x8x128xf32>
    %130 = arith.mulf %124, %129 : vector<1x8x128xf32>
    %131 = arith.addf %120, %130 : vector<1x8x128xf32>
    %c11 = arith.constant 11 : index
    %132 = memref.load %arg6[%c11] : memref<16xf32, #tpu.memory_space<smem>>
    %133 = vector.broadcast %132 : f32 to vector<1x8x128xf32>
    %134 = arith.mulf %133, %9 : vector<1x8x128xf32>
    %135 = math.exp %134 : vector<1x8x128xf32>
    %c11_21 = arith.constant 11 : index
    %136 = memref.load %arg7[%c11_21] : memref<16xf32, #tpu.memory_space<smem>>
    %137 = vector.extract_strided_slice %5 {offsets = [0, 11, 0], sizes = [1, 1, 128], strides = [1, 1, 1]} : vector<1x16x128xf32> to vector<1x1x128xf32>
    %138 = vector.broadcast %136 : f32 to vector<1x1x128xf32>
    %139 = arith.mulf %138, %137 : vector<1x1x128xf32>
    %140 = vector.broadcast %139 : vector<1x1x128xf32> to vector<1x8x128xf32>
    %141 = arith.mulf %135, %140 : vector<1x8x128xf32>
    %142 = arith.addf %131, %141 : vector<1x8x128xf32>
    %c12 = arith.constant 12 : index
    %143 = memref.load %arg6[%c12] : memref<16xf32, #tpu.memory_space<smem>>
    %144 = vector.broadcast %143 : f32 to vector<1x8x128xf32>
    %145 = arith.mulf %144, %9 : vector<1x8x128xf32>
    %146 = math.exp %145 : vector<1x8x128xf32>
    %c12_22 = arith.constant 12 : index
    %147 = memref.load %arg7[%c12_22] : memref<16xf32, #tpu.memory_space<smem>>
    %148 = vector.extract_strided_slice %5 {offsets = [0, 12, 0], sizes = [1, 1, 128], strides = [1, 1, 1]} : vector<1x16x128xf32> to vector<1x1x128xf32>
    %149 = vector.broadcast %147 : f32 to vector<1x1x128xf32>
    %150 = arith.mulf %149, %148 : vector<1x1x128xf32>
    %151 = vector.broadcast %150 : vector<1x1x128xf32> to vector<1x8x128xf32>
    %152 = arith.mulf %146, %151 : vector<1x8x128xf32>
    %153 = arith.addf %142, %152 : vector<1x8x128xf32>
    %c13 = arith.constant 13 : index
    %154 = memref.load %arg6[%c13] : memref<16xf32, #tpu.memory_space<smem>>
    %155 = vector.broadcast %154 : f32 to vector<1x8x128xf32>
    %156 = arith.mulf %155, %9 : vector<1x8x128xf32>
    %157 = math.exp %156 : vector<1x8x128xf32>
    %c13_23 = arith.constant 13 : index
    %158 = memref.load %arg7[%c13_23] : memref<16xf32, #tpu.memory_space<smem>>
    %159 = vector.extract_strided_slice %5 {offsets = [0, 13, 0], sizes = [1, 1, 128], strides = [1, 1, 1]} : vector<1x16x128xf32> to vector<1x1x128xf32>
    %160 = vector.broadcast %158 : f32 to vector<1x1x128xf32>
    %161 = arith.mulf %160, %159 : vector<1x1x128xf32>
    %162 = vector.broadcast %161 : vector<1x1x128xf32> to vector<1x8x128xf32>
    %163 = arith.mulf %157, %162 : vector<1x8x128xf32>
    %164 = arith.addf %153, %163 : vector<1x8x128xf32>
    %c14 = arith.constant 14 : index
    %165 = memref.load %arg6[%c14] : memref<16xf32, #tpu.memory_space<smem>>
    %166 = vector.broadcast %165 : f32 to vector<1x8x128xf32>
    %167 = arith.mulf %166, %9 : vector<1x8x128xf32>
    %168 = math.exp %167 : vector<1x8x128xf32>
    %c14_24 = arith.constant 14 : index
    %169 = memref.load %arg7[%c14_24] : memref<16xf32, #tpu.memory_space<smem>>
    %170 = vector.extract_strided_slice %5 {offsets = [0, 14, 0], sizes = [1, 1, 128], strides = [1, 1, 1]} : vector<1x16x128xf32> to vector<1x1x128xf32>
    %171 = vector.broadcast %169 : f32 to vector<1x1x128xf32>
    %172 = arith.mulf %171, %170 : vector<1x1x128xf32>
    %173 = vector.broadcast %172 : vector<1x1x128xf32> to vector<1x8x128xf32>
    %174 = arith.mulf %168, %173 : vector<1x8x128xf32>
    %175 = arith.addf %164, %174 : vector<1x8x128xf32>
    %c15 = arith.constant 15 : index
    %176 = memref.load %arg6[%c15] : memref<16xf32, #tpu.memory_space<smem>>
    %177 = vector.broadcast %176 : f32 to vector<1x8x128xf32>
    %178 = arith.mulf %177, %9 : vector<1x8x128xf32>
    %179 = math.exp %178 : vector<1x8x128xf32>
    %c15_25 = arith.constant 15 : index
    %180 = memref.load %arg7[%c15_25] : memref<16xf32, #tpu.memory_space<smem>>
    %181 = vector.extract_strided_slice %5 {offsets = [0, 15, 0], sizes = [1, 1, 128], strides = [1, 1, 1]} : vector<1x16x128xf32> to vector<1x1x128xf32>
    %182 = vector.broadcast %180 : f32 to vector<1x1x128xf32>
    %183 = arith.mulf %182, %181 : vector<1x1x128xf32>
    %184 = vector.broadcast %183 : vector<1x1x128xf32> to vector<1x8x128xf32>
    %185 = arith.mulf %179, %184 : vector<1x8x128xf32>
    %186 = arith.addf %175, %185 : vector<1x8x128xf32>
    %c0_26 = arith.constant 0 : index
    %c0_27 = arith.constant 0 : index
    %c0_28 = arith.constant 0 : index
    %187 = vector.load %arg9[%c0_26, %c0_27, %c0_28] : memref<1x8x1xf32, #tpu.memory_space<vmem>>, vector<1x8x1xf32>
    %cst_29 = arith.constant dense<0.000000e+00> : vector<1x8xf32>
    %188 = vector.multi_reduction <add>, %186, %cst_29 [2] : vector<1x8x128xf32> to vector<1x8xf32>
    %189 = vector.shape_cast %188 : vector<1x8xf32> to vector<1x8x1xf32>
    %190 = arith.addf %187, %189 : vector<1x8x1xf32>
    %c0_30 = arith.constant 0 : index
    %c0_31 = arith.constant 0 : index
    %c0_32 = arith.constant 0 : index
    %191 = vector.load %arg9[%c0_30, %c0_31, %c0_32] : memref<1x8x1xf32, #tpu.memory_space<vmem>>, vector<1x8x1xf32>
    tpu.vector_store %arg9[%c0_30, %c0_31, %c0_32], %190 {strides = array<i32>} : memref<1x8x1xf32, #tpu.memory_space<vmem>>, vector<1x8x1xf32>,
    %c0_i32_33 = arith.constant 0 : i32
    %192 = arith.cmpi eq, %arg2, %c0_i32_33 : i32
    %193 = arith.extui %192 : i1 to i32
    %c0_i32_34 = arith.constant 0 : i32
    %194 = arith.cmpi ne, %193, %c0_i32_34 : i32
    scf.if %194 {
      %c0_35 = arith.constant 0 : index
      %c0_36 = arith.constant 0 : index
      %c0_37 = arith.constant 0 : index
      %195 = vector.load %arg9[%c0_35, %c0_36, %c0_37] : memref<1x8x1xf32, #tpu.memory_space<vmem>>, vector<1x8x1xf32>
      %c0_38 = arith.constant 0 : index
      %196 = memref.load %arg8[%c0_38] : memref<1xf32, #tpu.memory_space<smem>>
      %197 = vector.broadcast %196 : f32 to vector<1x8x1xf32>
      %198 = arith.addf %195, %197 : vector<1x8x1xf32>
      %c0_39 = arith.constant 0 : index
      %c0_40 = arith.constant 0 : index
      %c0_41 = arith.constant 0 : index
      %199 = vector.load %arg9[%c0_39, %c0_40, %c0_41] : memref<1x8x1xf32, #tpu.memory_space<vmem>>, vector<1x8x1xf32>
      tpu.vector_store %arg9[%c0_39, %c0_40, %c0_41], %198 {strides = array<i32>} : memref<1x8x1xf32, #tpu.memory_space<vmem>>, vector<1x8x1xf32>,
    } else {
    }
    return
  }
  func.func @transform_0(%arg0: i32, %arg1: i32, %arg2: i32) -> (i32, i32, i32) {
    %c0_i32 = arith.constant 0 : i32
    %c0_i32_0 = arith.constant 0 : i32
    return %arg0, %c0_i32, %arg2 : i32, i32, i32
  }
  func.func @transform_1(%arg0: i32, %arg1: i32, %arg2: i32) -> (i32, i32, i32) {
    %c0_i32 = arith.constant 0 : i32
    %c0_i32_0 = arith.constant 0 : i32
    return %arg0, %arg1, %c0_i32 : i32, i32, i32
  }
  func.func @transform_2(%arg0: i32, %arg1: i32, %arg2: i32) -> (i32, i32, i32) {
    %c0_i32 = arith.constant 0 : i32
    %c0_i32_0 = arith.constant 0 : i32
    return %arg0, %c0_i32, %arg2 : i32, i32, i32
  }
  func.func @transform_3(%arg0: i32, %arg1: i32, %arg2: i32) -> i32 {
    %c0_i32 = arith.constant 0 : i32
    %c0_i32_0 = arith.constant 0 : i32
    return %c0_i32 : i32
  }
  func.func @transform_4(%arg0: i32, %arg1: i32, %arg2: i32) -> i32 {
    %c0_i32 = arith.constant 0 : i32
    %c0_i32_0 = arith.constant 0 : i32
    return %c0_i32 : i32
  }
  func.func @transform_5(%arg0: i32, %arg1: i32, %arg2: i32) -> i32 {
    %c0_i32 = arith.constant 0 : i32
    %c0_i32_0 = arith.constant 0 : i32
    return %c0_i32 : i32
  }
  func.func @transform_6(%arg0: i32, %arg1: i32, %arg2: i32) -> (i32, i32, i32) {
    %c0_i32 = arith.constant 0 : i32
    %c0_i32_0 = arith.constant 0 : i32
    return %arg0, %arg1, %c0_i32 : i32, i32, i32
  }
}

</mosaic_0001>

<llo_original>
// kernel: tpu_custom_call.1
$region0: #{tpu_custom_call.1}
  #allocation0 [shape = 'u32[]', space=smem, size = 0x4, offset = 0x4, fixed_abs, tag = 'smem constant byte address 0x4 - core index']
  #allocation1 [shape = 'u32[72,128]{1,0:T(1,128)}', space=vmem, size = 0x9000, scoped, tag = 'internal scratch']
  #allocation2 [shape = 'f32[1]{0:T(128)S(6)}', space=smem, size = 0x200, scoped, tag = 'scoped memory for tpu_custom_call.1']
  %s0 = inlined_call_operand.vmem [shape: f32[2,1,128], index: 0, kind: input, shape index: {}]
  %s1 = inlined_call_operand.vmem [shape: f32[2,8,1], index: 1, kind: input, shape index: {}]
  %s2 = inlined_call_operand.hbm [shape: f32[2,16,128], index: 2, kind: input, shape index: {}]
  %s3 = inlined_call_operand.vmem [shape: f32[16], index: 3, kind: input, shape index: {}]
  %s4 = inlined_call_operand.vmem [shape: f32[16], index: 4, kind: input, shape index: {}]
  %s5 = inlined_call_operand.<no memory space> [shape: f32[1], index: 5, kind: input, shape index: {}]
  %s6 = inlined_call_operand.vmem [shape: f32[2,8,1], index: 6, kind: output, shape index: {}]
  %s7 = sld [smem:[#allocation0]]
  $region77: #{tpu_custom_call.1} parent=0
    _
  %s9 = ssub.s32 1, %s7
  %s10 = scalar_select 0, %s9, %s7
  %11 = sst [smem:[#allocation2]] %s5
  $region1: #{tpu_custom_call.1} parent=0
    #allocation3 [shape = 'u8[16384]{0}', space=vmem, size = 0x4000, scoped, tag = 'input window, operand 2']
    #allocation4 [shape = 's32[2]{0}', space=sflag, size = 0x8, scoped, tag = 'scoped memory for tpu_custom_call.1']
    #allocation5 [shape = 's32[2]{0}', space=sflag, size = 0x8, scoped, tag = 'scoped memory for tpu_custom_call.1']
    #allocation6 [shape = 'u8[512]{0}', space=smem, size = 0x200, scoped, tag = 'input window, operand 3, single buffered']
    #allocation7 [shape = 'u8[512]{0}', space=smem, size = 0x200, scoped, tag = 'input window, operand 4, single buffered']
    #allocation8 [shape = 's32[1]{0}', space=sflag, size = 0x4, scoped, tag = 'scoped memory for tpu_custom_call.1']
    %12 = vsyncpa [#allocation4], 0
    %s13 = scalar_lea.sflag [#allocation4], 1
    %14 = vsyncpa %s13, 0
    %15 = vsyncpa [#allocation5], 0
    %16 = vsyncpa [#allocation8], 0
    loop: start=0, step=1, limit=4
    $region2: #{tpu_custom_call.1} parent=1 // loop_pre_header
      _
    $region3: #{tpu_custom_call.1} parent=1 // loop_header
      %s18 = sphi 0, %s22
      %p19 = scmp.ge.s32.totalorder %s18, 4
      %s25 = sphi 0, %s44
      %s26 = sphi 0, %s40
      %s27 = sphi 0, %s36
      %s28 = sphi 0, %s25
      %s29 = sphi 0, %s26
      %s30 = sphi 0, %s27
      %s31 = sphi 0, %s28
      %s32 = sphi 0, %s29
      %s33 = sphi 0, %s30
      %s49 = sphi 0, %s51
      %s52 = sphi 0, %s49
      %s53 = sphi 0, %s52
      %s69 = sphi 0, %s53
      %s77 = sphi 0, %s79
      %s80 = sphi 0, %s77
      %s81 = sphi 0, %s80
      %s97 = sphi 0, %s81
      %s105 = sphi 0, %s107
      %s108 = sphi 0, %s105
      %s109 = sphi 0, %s108
      %s125 = sphi 0, %s109
      %s129 = sphi 0, %s129
      %s131 = sphi 0, %s129
      %s132 = sphi 0, %s131
      %s146 = sphi 0, %s132
      %s150 = sphi 0, %s150
      %s152 = sphi 0, %s150
      %s153 = sphi 0, %s152
      %s167 = sphi 0, %s153
      %s171 = sphi 0, %s171
      %s173 = sphi 0, %s171
      %s174 = sphi 0, %s173
      %s188 = sphi 0, %s174
      %s196 = sphi 0, %s198
      %s199 = sphi 0, %s196
      %s200 = sphi 0, %s199
      %s216 = sphi 0, %s200
    $region4: #{tpu_custom_call.1} parent=1 // loop_header_branch
      %21 = sbr.rel (%p19) target = $region8
    $region5: #{tpu_custom_call.1} parent=1 // loop_body
      %s23 = ssub.s32 %s18, 1
      %s24 = ssub.s32 %s18, 2
      %s34 = sadd.s32 1, %s27
      %p35 = scmp.ge.s32.totalorder %s34, 1
      %s36 = scalar_select %p35, 0, %s34
      %s37 = sadd.s32 1, %s26
      %s38 = scalar_select %p35, %s37, %s26
      %p39 = scmp.ge.s32.totalorder %s38, 1
      %s40 = scalar_select %p39, 0, %s38
      %s41 = sadd.s32 1, %s25
      %s42 = scalar_select %p39, %s41, %s25
      %p43 = scmp.ge.s32.totalorder %s42, 2
      %s44 = scalar_select %p43, 0, %s42
      %s45 = ssub.s32 %s25, %s44
      %s46 = ssub.s32 %s27, %s36
      %s47 = sor.u32 %s45, %s46
      %p48 = scmp.eq.s32.totalorder %s47, 0
      %s50 = sadd.s32 %s49, 1
      %s51 = scalar_select %p48, %s49, %s50
      %p54 = pneg %p48
      %p55 = scmp.eq.s32.totalorder %s18, 1
      %p56 = por %p54, %p55
      %p57 = scmp.ne.s32.totalorder %s49, %s52
      %p58 = scmp.eq.s32.totalorder %s18, 0
      %p59 = por %p57, %p58
      %p60 = scmp.ne.s32.totalorder %s49, %s52
      %p61 = scmp.eq.s32.totalorder %s23, 1
      %p62 = por %p60, %p61
      %p63 = scmp.ne.s32.totalorder %s52, %s53
      %p64 = scmp.eq.s32.totalorder %s23, 0
      %p65 = por %p63, %p64
      %p66 = scmp.ne.s32.totalorder %s52, %s53
      %p67 = scmp.eq.s32.totalorder %s24, 1
      %p68 = por %p66, %p67
      %p70 = scmp.ne.s32.totalorder %s53, %s69
      %p71 = scmp.eq.s32.totalorder %s24, 0
      %p72 = por %p70, %p71
      %s73 = ssub.s32 %s25, %s44
      %s74 = ssub.s32 %s26, %s40
      %s75 = sor.u32 %s73, %s74
      %p76 = scmp.eq.s32.totalorder %s75, 0
      %s78 = sadd.s32 %s77, 1
      %s79 = scalar_select %p76, %s77, %s78
      %p82 = pneg %p76
      %p83 = scmp.eq.s32.totalorder %s18, 1
      %p84 = por %p82, %p83
      %p85 = scmp.ne.s32.totalorder %s77, %s80
      %p86 = scmp.eq.s32.totalorder %s18, 0
      %p87 = por %p85, %p86
      %p88 = scmp.ne.s32.totalorder %s77, %s80
      %p89 = scmp.eq.s32.totalorder %s23, 1
      %p90 = por %p88, %p89
      %p91 = scmp.ne.s32.totalorder %s80, %s81
      %p92 = scmp.eq.s32.totalorder %s23, 0
      %p93 = por %p91, %p92
      %p94 = scmp.ne.s32.totalorder %s80, %s81
      %p95 = scmp.eq.s32.totalorder %s24, 1
      %p96 = por %p94, %p95
      %p98 = scmp.ne.s32.totalorder %s81, %s97
      %p99 = scmp.eq.s32.totalorder %s24, 0
      %p100 = por %p98, %p99
      %s101 = ssub.s32 %s25, %s44
      %s102 = ssub.s32 %s27, %s36
      %s103 = sor.u32 %s101, %s102
      %p104 = scmp.eq.s32.totalorder %s103, 0
      %s106 = sadd.s32 %s105, 1
      %s107 = scalar_select %p104, %s105, %s106
      %p110 = pneg %p104
      %p111 = scmp.eq.s32.totalorder %s18, 1
      %p112 = por %p110, %p111
      %p113 = scmp.ne.s32.totalorder %s105, %s108
      %p114 = scmp.eq.s32.totalorder %s18, 0
      %p115 = por %p113, %p114
      %p116 = scmp.ne.s32.totalorder %s105, %s108
      %p117 = scmp.eq.s32.totalorder %s23, 1
      %p118 = por %p116, %p117
      %p119 = scmp.ne.s32.totalorder %s108, %s109
      %p120 = scmp.eq.s32.totalorder %s23, 0
      %p121 = por %p119, %p120
      %p122 = scmp.ne.s32.totalorder %s108, %s109
      %p123 = scmp.eq.s32.totalorder %s24, 1
      %p124 = por %p122, %p123
      %p126 = scmp.ne.s32.totalorder %s109, %s125
      %p127 = scmp.eq.s32.totalorder %s24, 0
      %p128 = por %p126, %p127
      %s130 = sadd.s32 %s129, 1
      %p133 = scmp.eq.s32.totalorder %s18, 1
      %p134 = scmp.ne.s32.totalorder %s129, %s131
      %p135 = scmp.eq.s32.totalorder %s18, 0
      %p136 = por %p134, %p135
      %p137 = scmp.ne.s32.totalorder %s129, %s131
      %p138 = scmp.eq.s32.totalorder %s23, 1
      %p139 = por %p137, %p138
      %p140 = scmp.ne.s32.totalorder %s131, %s132
      %p141 = scmp.eq.s32.totalorder %s23, 0
      %p142 = por %p140, %p141
      %p143 = scmp.ne.s32.totalorder %s131, %s132
      %p144 = scmp.eq.s32.totalorder %s24, 1
      %p145 = por %p143, %p144
      %p147 = scmp.ne.s32.totalorder %s132, %s146
      %p148 = scmp.eq.s32.totalorder %s24, 0
      %p149 = por %p147, %p148
      %s151 = sadd.s32 %s150, 1
      %p154 = scmp.eq.s32.totalorder %s18, 1
      %p155 = scmp.ne.s32.totalorder %s150, %s152
      %p156 = scmp.eq.s32.totalorder %s18, 0
      %p157 = por %p155, %p156
      %p158 = scmp.ne.s32.totalorder %s150, %s152
      %p159 = scmp.eq.s32.totalorder %s23, 1
      %p160 = por %p158, %p159
      %p161 = scmp.ne.s32.totalorder %s152, %s153
      %p162 = scmp.eq.s32.totalorder %s23, 0
      %p163 = por %p161, %p162
      %p164 = scmp.ne.s32.totalorder %s152, %s153
      %p165 = scmp.eq.s32.totalorder %s24, 1
      %p166 = por %p164, %p165
      %p168 = scmp.ne.s32.totalorder %s153, %s167
      %p169 = scmp.eq.s32.totalorder %s24, 0
      %p170 = por %p168, %p169
      %s172 = sadd.s32 %s171, 1
      %p175 = scmp.eq.s32.totalorder %s18, 1
      %p176 = scmp.ne.s32.totalorder %s171, %s173
      %p177 = scmp.eq.s32.totalorder %s18, 0
      %p178 = por %p176, %p177
      %p179 = scmp.ne.s32.totalorder %s171, %s173
      %p180 = scmp.eq.s32.totalorder %s23, 1
      %p181 = por %p179, %p180
      %p182 = scmp.ne.s32.totalorder %s173, %s174
      %p183 = scmp.eq.s32.totalorder %s23, 0
      %p184 = por %p182, %p183
      %p185 = scmp.ne.s32.totalorder %s173, %s174
      %p186 = scmp.eq.s32.totalorder %s24, 1
      %p187 = por %p185, %p186
      %p189 = scmp.ne.s32.totalorder %s174, %s188
      %p190 = scmp.eq.s32.totalorder %s24, 0
      %p191 = por %p189, %p190
      %s192 = ssub.s32 %s25, %s44
      %s193 = ssub.s32 %s26, %s40
      %s194 = sor.u32 %s192, %s193
      %p195 = scmp.eq.s32.totalorder %s194, 0
      %s197 = sadd.s32 %s196, 1
      %s198 = scalar_select %p195, %s196, %s197
      %p201 = pneg %p195
      %p202 = scmp.eq.s32.totalorder %s18, 1
      %p203 = por %p201, %p202
      %p204 = scmp.ne.s32.totalorder %s196, %s199
      %p205 = scmp.eq.s32.totalorder %s18, 0
      %p206 = por %p204, %p205
      %p207 = scmp.ne.s32.totalorder %s196, %s199
      %p208 = scmp.eq.s32.totalorder %s23, 1
      %p209 = por %p207, %p208
      %p210 = scmp.ne.s32.totalorder %s199, %s200
      %p211 = scmp.eq.s32.totalorder %s23, 0
      %p212 = por %p210, %p211
      %p213 = scmp.ne.s32.totalorder %s199, %s200
      %p214 = scmp.eq.s32.totalorder %s24, 1
      %p215 = por %p213, %p214
      %p217 = scmp.ne.s32.totalorder %s200, %s216
      %p218 = scmp.eq.s32.totalorder %s24, 0
      %p219 = por %p217, %p218
      %p220 = scmp.le.s32.totalorder 1, %s18
      %p221 = scmp.lt.s32.totalorder %s18, 3
      %p222 = pnand %p220, %p221
      %p223 = pneg %p222
      // Predicated region
      $region9: #{tpu_custom_call.1} parent=5 // pred_check
        _
      $region10: #{tpu_custom_call.1} parent=5 // pred_check_branch
        %225 = sbr.rel (%p222) target = $region12
      $region11: #{tpu_custom_call.1} parent=5 // pred_region
        %s226 = ssub.s32 %s18, 1
        // Predicated region
        $region13: #{tpu_custom_call.1} parent=11 // pred_check
          %p227 = pneg %p142
        $region14: #{tpu_custom_call.1} parent=11 // pred_check_branch
          %229 = sbr.rel (%p227) target = $region16
        $region15: #{tpu_custom_call.1} parent=11 // pred_region
          %231 = vsyncadd [#allocation5], 0
          %s233 = sshll.u32 %s3, 4
          %s234 = int_to_ptr.vmem [resolvable:$true] %s233
          %236 = dma.vmem_to_smem %s234, 16, [#allocation6], [#allocation5]
        $region16: #{tpu_custom_call.1} parent=11 // pred_fallthru
          _
        // Predicated region
        $region17: #{tpu_custom_call.1} parent=11 // pred_check
          %p237 = pneg %p163
        $region18: #{tpu_custom_call.1} parent=11 // pred_check_branch
          %239 = sbr.rel (%p237) target = $region20
        $region19: #{tpu_custom_call.1} parent=11 // pred_region
          %241 = vsyncadd [#allocation8], 0
          %s243 = sshll.u32 %s4, 4
          %s244 = int_to_ptr.vmem [resolvable:$true] %s243
          %246 = dma.vmem_to_smem %s244, 16, [#allocation7], [#allocation8]
        $region20: #{tpu_custom_call.1} parent=11 // pred_fallthru
          _
        // Predicated region
        $region21: #{tpu_custom_call.1} parent=11 // pred_check
          %p247 = pneg %p184
        $region22: #{tpu_custom_call.1} parent=11 // pred_check_branch
          %249 = sbr.rel (%p247) target = $region24
        $region23: #{tpu_custom_call.1} parent=11 // pred_region
          _
        $region24: #{tpu_custom_call.1} parent=11 // pred_fallthru
          _
      $region12: #{tpu_custom_call.1} parent=5 // pred_fallthru
        _
      %p250 = scmp.lt.s32.totalorder %s18, 2
      // Predicated region
      $region25: #{tpu_custom_call.1} parent=5 // pred_check
        %p251 = pneg %p250
      $region26: #{tpu_custom_call.1} parent=5 // pred_check_branch
        %253 = sbr.rel (%p251) target = $region28
      $region27: #{tpu_custom_call.1} parent=5 // pred_region
        // Predicated region
        $region29: #{tpu_custom_call.1} parent=27 // pred_check
          %p254 = pneg %p59
        $region30: #{tpu_custom_call.1} parent=27 // pred_check_branch
          %256 = sbr.rel (%p254) target = $region32
        $region31: #{tpu_custom_call.1} parent=27 // pred_region
          %p257 = scmp.lt.s32.totalorder %s25, 1
          %s258 = scalar_select %p257, %s25, 1
          %p259 = scmp.lt.s32.totalorder %s27, 0
          %s260 = scalar_select %p259, %s27, 0
          %s261 = sadd.s32 %s260, %s258
          %s262 = scalar_lea.vmem %s0, %s261
        $region32: #{tpu_custom_call.1} parent=27 // pred_fallthru
          _
        // Predicated region
        $region33: #{tpu_custom_call.1} parent=27 // pred_check
          %p263 = pneg %p87
        $region34: #{tpu_custom_call.1} parent=27 // pred_check_branch
          %265 = sbr.rel (%p263) target = $region36
        $region35: #{tpu_custom_call.1} parent=27 // pred_region
          %p266 = scmp.lt.s32.totalorder %s25, 1
          %s267 = scalar_select %p266, %s25, 1
          %p268 = scmp.lt.s32.totalorder %s26, 0
          %s269 = scalar_select %p268, %s26, 0
          %s270 = sadd.s32 %s269, %s267
          %s271 = smul.addr %s270, 8
          %s272 = scalar_lea.vmem %s1, %s271
        $region36: #{tpu_custom_call.1} parent=27 // pred_fallthru
          _
        // Predicated region
        $region37: #{tpu_custom_call.1} parent=27 // pred_check
          %p273 = pneg %p115
        $region38: #{tpu_custom_call.1} parent=27 // pred_check_branch
          %275 = sbr.rel (%p273) target = $region40
        $region39: #{tpu_custom_call.1} parent=27 // pred_region
          %s276 = sand.u32 %s105, 1
          %s277 = scalar_lea.sflag [#allocation4], %s276
          %s278 = sand.u32 %s105, 1
          %s279 = smul.addr %s278, 16
          %s280 = scalar_lea.vmem [#allocation3], %s279
          %282 = vsyncadd %s277, 0
          %s283 = smul.addr %s25, 2
          %s284 = sadd.s32 %s27, %s283
          %s285 = smul.addr %s284, 8
          %s286 = scalar_lea.hbm %s2, %s285
          %s287 = sshll.u32 %s286, 4
          %s288 = int_to_ptr.hbm [resolvable:$true] %s287
          %s289 = sshll.u32 %s280, 4
          %s290 = int_to_ptr.vmem [resolvable:$true] %s289
          %295 = dma.hbm_to_vmem [thread:$0]  %s288, 256, %s290, %s277, 128, 128, 8
        $region40: #{tpu_custom_call.1} parent=27 // pred_fallthru
          _
      $region28: #{tpu_custom_call.1} parent=5 // pred_fallthru
        _
      %p296 = scmp.le.s32.totalorder 1, %s18
      %p297 = scmp.lt.s32.totalorder %s18, 3
      %p298 = pnand %p296, %p297
      %p299 = pneg %p298
      // Predicated region
      $region41: #{tpu_custom_call.1} parent=5 // pred_check
        _
      $region42: #{tpu_custom_call.1} parent=5 // pred_check_branch
        %301 = sbr.rel (%p298) target = $region44
      $region43: #{tpu_custom_call.1} parent=5 // pred_region
        %s302 = ssub.s32 %s18, 1
        %s303 = sand.u32 %s108, 1
        %s304 = scalar_lea.sflag [#allocation4], %s303
        %s305 = sand.u32 %s108, 1
        %s306 = smul.addr %s305, 16
        %s307 = scalar_lea.vmem [#allocation3], %s306
        // Predicated region
        $region45: #{tpu_custom_call.1} parent=43 // pred_check
          %p308 = pneg %p121
        $region46: #{tpu_custom_call.1} parent=43 // pred_check_branch
          %310 = sbr.rel (%p308) target = $region48
        $region47: #{tpu_custom_call.1} parent=43 // pred_region
          %312 = dma.done %s304, 256
        $region48: #{tpu_custom_call.1} parent=43 // pred_fallthru
          _
        // Predicated region
        $region49: #{tpu_custom_call.1} parent=43 // pred_check
          %p313 = pneg %p142
        $region50: #{tpu_custom_call.1} parent=43 // pred_check_branch
          %315 = sbr.rel (%p313) target = $region52
        $region51: #{tpu_custom_call.1} parent=43 // pred_region
          %317 = dma.done [#allocation5], 16
        $region52: #{tpu_custom_call.1} parent=43 // pred_fallthru
          _
        // Predicated region
        $region53: #{tpu_custom_call.1} parent=43 // pred_check
          %p318 = pneg %p163
        $region54: #{tpu_custom_call.1} parent=43 // pred_check_branch
          %320 = sbr.rel (%p318) target = $region56
        $region55: #{tpu_custom_call.1} parent=43 // pred_region
          %322 = dma.done [#allocation8], 16
        $region56: #{tpu_custom_call.1} parent=43 // pred_fallthru
          _
        %323 = sfence
        %p324 = scmp.lt.s32.totalorder %s28, 1
        %s325 = scalar_select %p324, %s28, 1
        %p326 = scmp.lt.s32.totalorder %s30, 0
        %s327 = scalar_select %p326, %s30, 0
        %s328 = sadd.s32 %s327, %s325
        %s329 = scalar_lea.vmem %s0, %s328
        %p330 = pneg %p65
        %p331 = pneg %p62
        %p332 = scmp.lt.s32.totalorder %s28, 1
        %s333 = scalar_select %p332, %s28, 1
        %p334 = scmp.lt.s32.totalorder %s29, 0
        %s335 = scalar_select %p334, %s29, 0
        %s336 = sadd.s32 %s335, %s333
        %s337 = smul.addr %s336, 8
        %s338 = scalar_lea.vmem %s1, %s337
        %p339 = pneg %p93
        %p340 = pneg %p90
        %s341 = sand.u32 %s108, 1
        %s342 = scalar_lea.sflag [#allocation4], %s341
        %s343 = sand.u32 %s108, 1
        %s344 = smul.addr %s343, 16
        %s345 = scalar_lea.vmem [#allocation3], %s344
        %p346 = pneg %p121
        %p347 = pneg %p118
        %p348 = pneg %p142
        %p349 = pneg %p139
        %p350 = pneg %p163
        %p351 = pneg %p160
        %p352 = pneg %p184
        %p353 = pneg %p181
        %p354 = pneg %p212
        %p355 = pneg %p209
        %p356 = scmp.lt.s32.totalorder %s28, 1
        %s357 = scalar_select %p356, %s28, 1
        %p358 = scmp.lt.s32.totalorder %s29, 0
        %s359 = scalar_select %p358, %s29, 0
        %s360 = sadd.s32 %s359, %s357
        %s361 = smul.addr %s360, 8
        %s362 = scalar_lea.vmem %s6, %s361
        %p363 = scmp.lt.s32.totalorder %s28, 1
        %s364 = scalar_select %p363, %s28, 1
        %p365 = scmp.lt.s32.totalorder %s30, 0
        %s366 = scalar_select %p365, %s30, 0
        %s367 = sadd.s32 %s366, %s364
        %s368 = scalar_lea.vmem %s0, %s367
        %p369 = scmp.lt.s32.totalorder %s28, 1
        %s370 = scalar_select %p369, %s28, 1
        %p371 = scmp.lt.s32.totalorder %s29, 0
        %s372 = scalar_select %p371, %s29, 0
        %s373 = sadd.s32 %s372, %s370
        %s374 = smul.addr %s373, 8
        %s375 = scalar_lea.vmem %s1, %s374
        %p376 = scmp.lt.s32.totalorder %s28, 1
        %s377 = scalar_select %p376, %s28, 1
        %p378 = scmp.lt.s32.totalorder %s29, 0
        %s379 = scalar_select %p378, %s29, 0
        %s380 = sadd.s32 %s379, %s377
        %s381 = smul.addr %s380, 8
        %s382 = scalar_lea.vmem %s6, %s381
        %p383 = scmp.eq.s32.totalorder %s30, 0
        // Predicated region
        $region57: #{tpu_custom_call.1} parent=43 // pred_check
          %p384 = pneg %p383
        $region58: #{tpu_custom_call.1} parent=43 // pred_check_branch
          %386 = sbr.rel (%p384) target = $region60
        $region59: #{tpu_custom_call.1} parent=43 // pred_region
          %vm387 = vcmask 7168
          %388 = vst.msk [vmem:[%s382] sm:$0xff] %vm387, 0.0
        $region60: #{tpu_custom_call.1} parent=43 // pred_fallthru
          _
        %v389 = vld [vmem:[%s368] sm:$0x1]
        %v390 = vld [vmem:[%s375] sm:$0xff]
        %v391 = vld [vmem:[%s307] sm:$0xff]
        %v392 = vld [vmem:[%s307 + $0x8] sm:$0xff]
        %v394 = vperm.slane %v389, 0
        %397 = vset.pattern.permute.xlu0 0
        %398 = vperm.xlu0 %397, %v390
        %v399 = vpop.permute.xlu0 %398
        %v401 = vsub.f32 %v394, %v399
        %v402 = vmul.f32 %v401, %v401
        %s403 = sld [smem:[#allocation6]]
        %v404 = vstv %s403
        %v405 = vmul.f32 %v404, %v402
        %v406 = vmul.f32 %v405, 1.442695
        %v407 = vpow.pop %v406
        %s408 = sld [smem:[#allocation7]]
        %v409 = vstv %s408
        %v410 = vmul.f32 %v409, %v391
        %v411 = vperm.slane %v410, 0
        %v412 = vmul.f32 %v407, %v411
        %v413 = vadd.f32 %v412, 0.0
        %s414 = sld [smem:[#allocation6 + $0x1]]
        %v415 = vstv %s414
        %v416 = vmul.f32 %v415, %v402
        %v417 = vmul.f32 %v416, 1.442695
        %v418 = vpow.pop %v417
        %s419 = sld [smem:[#allocation7 + $0x1]]
        %v420 = vstv %s419
        %v421 = vmul.f32 %v420, %v391
        %v422 = vperm.slane %v421, 1
        %v423 = vmul.f32 %v418, %v422
        %v424 = vadd.f32 %v413, %v423
        %s425 = sld [smem:[#allocation6 + $0x2]]
        %v426 = vstv %s425
        %v427 = vmul.f32 %v426, %v402
        %v428 = vmul.f32 %v427, 1.442695
        %v429 = vpow.pop %v428
        %s430 = sld [smem:[#allocation7 + $0x2]]
        %v431 = vstv %s430
        %v432 = vmul.f32 %v431, %v391
        %v433 = vperm.slane %v432, 2
        %v434 = vmul.f32 %v429, %v433
        %v435 = vadd.f32 %v424, %v434
        %s436 = sld [smem:[#allocation6 + $0x3]]
        %v437 = vstv %s436
        %v438 = vmul.f32 %v437, %v402
        %v439 = vmul.f32 %v438, 1.442695
        %v440 = vpow.pop %v439
        %s441 = sld [smem:[#allocation7 + $0x3]]
        %v442 = vstv %s441
        %v443 = vmul.f32 %v442, %v391
        %v444 = vperm.slane %v443, 3
        %v445 = vmul.f32 %v440, %v444
        %v446 = vadd.f32 %v435, %v445
        %s447 = sld [smem:[#allocation6 + $0x4]]
        %v448 = vstv %s447
        %v449 = vmul.f32 %v448, %v402
        %v450 = vmul.f32 %v449, 1.442695
        %v451 = vpow.pop %v450
        %s452 = sld [smem:[#allocation7 + $0x4]]
        %v453 = vstv %s452
        %v454 = vmul.f32 %v453, %v391
        %v455 = vperm.slane %v454, 4
        %v456 = vmul.f32 %v451, %v455
        %v457 = vadd.f32 %v446, %v456
        %s458 = sld [smem:[#allocation6 + $0x5]]
        %v459 = vstv %s458
        %v460 = vmul.f32 %v459, %v402
        %v461 = vmul.f32 %v460, 1.442695
        %v462 = vpow.pop %v461
        %s463 = sld [smem:[#allocation7 + $0x5]]
        %v464 = vstv %s463
        %v465 = vmul.f32 %v464, %v391
        %v466 = vperm.slane %v465, 5
        %v467 = vmul.f32 %v462, %v466
        %v468 = vadd.f32 %v457, %v467
        %s469 = sld [smem:[#allocation6 + $0x6]]
        %v470 = vstv %s469
        %v471 = vmul.f32 %v470, %v402
        %v472 = vmul.f32 %v471, 1.442695
        %v473 = vpow.pop %v472
        %s474 = sld [smem:[#allocation7 + $0x6]]
        %v475 = vstv %s474
        %v476 = vmul.f32 %v475, %v391
        %v477 = vperm.slane %v476, 6
        %v478 = vmul.f32 %v473, %v477
        %v479 = vadd.f32 %v468, %v478
        %s480 = sld [smem:[#allocation6 + $0x7]]
        %v481 = vstv %s480
        %v482 = vmul.f32 %v481, %v402
        %v483 = vmul.f32 %v482, 1.442695
        %v484 = vpow.pop %v483
        %s485 = sld [smem:[#allocation7 + $0x7]]
        %v486 = vstv %s485
        %v487 = vmul.f32 %v486, %v391
        %v488 = vperm.slane %v487, 7
        %v489 = vmul.f32 %v484, %v488
        %v490 = vadd.f32 %v479, %v489
        %s491 = sld [smem:[#allocation6 + $0x8]]
        %v492 = vstv %s491
        %v493 = vmul.f32 %v492, %v402
        %v494 = vmul.f32 %v493, 1.442695
        %v495 = vpow.pop %v494
        %s496 = sld [smem:[#allocation7 + $0x8]]
        %v497 = vstv %s496
        %v498 = vmul.f32 %v497, %v392
        %v499 = vperm.slane %v498, 0
        %v500 = vmul.f32 %v495, %v499
        %v501 = vadd.f32 %v490, %v500
        %s502 = sld [smem:[#allocation6 + $0x9]]
        %v503 = vstv %s502
        %v504 = vmul.f32 %v503, %v402
        %v505 = vmul.f32 %v504, 1.442695
        %v506 = vpow.pop %v505
        %s507 = sld [smem:[#allocation7 + $0x9]]
        %v508 = vstv %s507
        %v509 = vmul.f32 %v508, %v392
        %v510 = vperm.slane %v509, 1
        %v511 = vmul.f32 %v506, %v510
        %v512 = vadd.f32 %v501, %v511
        %s513 = sld [smem:[#allocation6 + $0xa]]
        %v514 = vstv %s513
        %v515 = vmul.f32 %v514, %v402
        %v516 = vmul.f32 %v515, 1.442695
        %v517 = vpow.pop %v516
        %s518 = sld [smem:[#allocation7 + $0xa]]
        %v519 = vstv %s518
        %v520 = vmul.f32 %v519, %v392
        %v521 = vperm.slane %v520, 2
        %v522 = vmul.f32 %v517, %v521
        %v523 = vadd.f32 %v512, %v522
        %s524 = sld [smem:[#allocation6 + $0xb]]
        %v525 = vstv %s524
        %v526 = vmul.f32 %v525, %v402
        %v527 = vmul.f32 %v526, 1.442695
        %v528 = vpow.pop %v527
        %s529 = sld [smem:[#allocation7 + $0xb]]
        %v530 = vstv %s529
        %v531 = vmul.f32 %v530, %v392
        %v532 = vperm.slane %v531, 3
        %v533 = vmul.f32 %v528, %v532
        %v534 = vadd.f32 %v523, %v533
        %s535 = sld [smem:[#allocation6 + $0xc]]
        %v536 = vstv %s535
        %v537 = vmul.f32 %v536, %v402
        %v538 = vmul.f32 %v537, 1.442695
        %v539 = vpow.pop %v538
        %s540 = sld [smem:[#allocation7 + $0xc]]
        %v541 = vstv %s540
        %v542 = vmul.f32 %v541, %v392
        %v543 = vperm.slane %v542, 4
        %v544 = vmul.f32 %v539, %v543
        %v545 = vadd.f32 %v534, %v544
        %s546 = sld [smem:[#allocation6 + $0xd]]
        %v547 = vstv %s546
        %v548 = vmul.f32 %v547, %v402
        %v549 = vmul.f32 %v548, 1.442695
        %v550 = vpow.pop %v549
        %s551 = sld [smem:[#allocation7 + $0xd]]
        %v552 = vstv %s551
        %v553 = vmul.f32 %v552, %v392
        %v554 = vperm.slane %v553, 5
        %v555 = vmul.f32 %v550, %v554
        %v556 = vadd.f32 %v545, %v555
        %s557 = sld [smem:[#allocation6 + $0xe]]
        %v558 = vstv %s557
        %v559 = vmul.f32 %v558, %v402
        %v560 = vmul.f32 %v559, 1.442695
        %v561 = vpow.pop %v560
        %s562 = sld [smem:[#allocation7 + $0xe]]
        %v563 = vstv %s562
        %v564 = vmul.f32 %v563, %v392
        %v565 = vperm.slane %v564, 6
        %v566 = vmul.f32 %v561, %v565
        %v567 = vadd.f32 %v556, %v566
        %s568 = sld [smem:[#allocation6 + $0xf]]
        %v569 = vstv %s568
        %v570 = vmul.f32 %v569, %v402
        %v571 = vmul.f32 %v570, 1.442695
        %v572 = vpow.pop %v571
        %s573 = sld [smem:[#allocation7 + $0xf]]
        %v574 = vstv %s573
        %v575 = vmul.f32 %v574, %v392
        %v576 = vperm.slane %v575, 7
        %v577 = vmul.f32 %v572, %v576
        %v578 = vadd.f32 %v567, %v577
        %v579 = vld [vmem:[%s382] sm:$0xff]
        %580 = vadd.xlane.f32.xlu0 %v578
        %v581 = vpop.xlane.xlu0 %580
        %v582 = vadd.f32 %v579, %v581
        %vm583 = vcmask 7168
        %584 = vst.msk [vmem:[%s382] sm:$0xff] %vm583, %v582
        // Predicated region
        $region61: #{tpu_custom_call.1} parent=43 // pred_check
          %p585 = pneg %p383
        $region62: #{tpu_custom_call.1} parent=43 // pred_check_branch
          %587 = sbr.rel (%p585) target = $region64
        $region63: #{tpu_custom_call.1} parent=43 // pred_region
          %v588 = vld [vmem:[%s382] sm:$0xff]
          %s589 = sld [smem:[#allocation2]]
          %v590 = vstv %s589
          %v591 = vadd.f32 %v588, %v590
          %592 = vst.msk [vmem:[%s382] sm:$0xff] %vm583, %v591
        $region64: #{tpu_custom_call.1} parent=43 // pred_fallthru
          _
        %p593 = scmp.lt.s32.totalorder %s28, 1
        %s594 = scalar_select %p593, %s28, 1
        %p595 = scmp.lt.s32.totalorder %s29, 0
        %s596 = scalar_select %p595, %s29, 0
        %s597 = sadd.s32 %s596, %s594
        %s598 = smul.addr %s597, 8
        %s599 = scalar_lea.vmem %s6, %s598
        // Predicated region
        $region65: #{tpu_custom_call.1} parent=43 // pred_check
          %p600 = pneg %p209
        $region66: #{tpu_custom_call.1} parent=43 // pred_check_branch
          %602 = sbr.rel (%p600) target = $region68
        $region67: #{tpu_custom_call.1} parent=43 // pred_region
          _
        $region68: #{tpu_custom_call.1} parent=43 // pred_fallthru
          _
      $region44: #{tpu_custom_call.1} parent=5 // pred_fallthru
        _
      %p603 = scmp.le.s32.totalorder 2, %s18
      // Predicated region
      $region69: #{tpu_custom_call.1} parent=5 // pred_check
        %p604 = pneg %p603
      $region70: #{tpu_custom_call.1} parent=5 // pred_check_branch
        %606 = sbr.rel (%p604) target = $region72
      $region71: #{tpu_custom_call.1} parent=5 // pred_region
        %s607 = ssub.s32 %s18, 2
        // Predicated region
        $region73: #{tpu_custom_call.1} parent=71 // pred_check
          %p608 = pneg %p215
        $region74: #{tpu_custom_call.1} parent=71 // pred_check_branch
          %610 = sbr.rel (%p608) target = $region76
        $region75: #{tpu_custom_call.1} parent=71 // pred_region
          %p611 = scmp.lt.s32.totalorder %s31, 1
          %s612 = scalar_select %p611, %s31, 1
          %p613 = scmp.lt.s32.totalorder %s32, 0
          %s614 = scalar_select %p613, %s32, 0
          %s615 = sadd.s32 %s614, %s612
          %s616 = smul.addr %s615, 8
          %s617 = scalar_lea.vmem %s6, %s616
        $region76: #{tpu_custom_call.1} parent=71 // pred_fallthru
          _
      $region72: #{tpu_custom_call.1} parent=5 // pred_fallthru
        _
    $region6: #{tpu_custom_call.1} parent=1 // loop_footer
      %s22 = sadd.s32 1, %s18
    $region7: #{tpu_custom_call.1} parent=1 // loop_footer_branch
      %17 = sbr.rel target = $region3
    $region8: #{tpu_custom_call.1} parent=1 // loop_exit
      _
    %618 = vsyncpa [#allocation4], 1
    %s619 = scalar_lea.sflag [#allocation4], 1
    %620 = vsyncpa %s619, 1
    %621 = vsyncpa [#allocation5], 1
    %s622 = scalar_lea.sflag [#allocation5], 1
    %623 = vsyncpa %s622, 1
    %624 = vsyncpa [#allocation8], 1

</llo_original>
